<compile_context>
chip_gen: v6e
topology: v6e:2x2x1
jax: 0.10.0
libtpu: 0.0.40
codegen_flags: <defaults>
</compile_context>

<pallas_src>
import numpy as np
import jax
import jax.numpy as jnp
from jax.experimental import pallas as pl
from jax.experimental.pallas import tpu as pltpu


def _round_up(x, m):
    return ((x + m - 1) // m) * m


def _critic_kernel(xa_ref, w1_ref, b1_ref, w2_ref, b2_ref, w3_ref, b3_ref, o_ref):
    # fc1 on the fused/zero-padded [x, a] tile: one MXU dot, f32 accumulation.
    h1 = jnp.dot(xa_ref[...], w1_ref[...],
                 preferred_element_type=jnp.float32) + b1_ref[...]
    h1 = jnp.maximum(h1, 0.0)                                # relu(fc1), f32

    # fc2: cast the activation to the MXU operand dtype, accumulate in f32.
    h2 = jnp.dot(h1.astype(w2_ref.dtype), w2_ref[...],
                 preferred_element_type=jnp.float32) + b2_ref[...]
    h2 = jnp.maximum(h2, 0.0)                                # relu(fc2), f32

    # fc3 (256 -> 1): VPU multiply + lane reduction instead of an N=1 MXU pass.
    q = jnp.sum(h2 * w3_ref[...], axis=-1, keepdims=True) + b3_ref[0, 0]
    o_ref[...] = q.astype(o_ref.dtype)                       # (tb, 1)


def critic_forward(x, a, params, *, block_b=1024, mxu_dtype=jnp.bfloat16):
    """InAC critic forward: x (B, obs_dim) f32, a (B, act_dim) f32 -> (B, 1) f32.

    NOTE: with the default mxu_dtype=bfloat16 both the weights AND the
    activations (x, a, h1) are quantized to bf16 for the MXU; accumulation,
    biases, relus and the 256->1 head stay in f32. Use mxu_dtype=jnp.float32
    for a high-precision path.
    """
    w1, b1, w2, b2, w3, b3 = params
    B, obs_dim = x.shape
    act_dim = a.shape[1]
    d_in = obs_dim + act_dim
    H = w1.shape[1]
    assert w1.shape[0] == d_in and w2.shape == (H, H) and w3.shape[0] == H

    # Fused [x, a] input, zero-padded to aligned columns (>= 128-byte f32 rows).
    d_pad = max(32, _round_up(d_in, 8))
    xa = jnp.concatenate([x, a], axis=1).astype(mxu_dtype)
    w1_p = w1.astype(mxu_dtype)
    if d_pad != d_in:
        xa = jnp.pad(xa, ((0, 0), (0, d_pad - d_in)))
        w1_p = jnp.pad(w1_p, ((0, d_pad - d_in), (0, 0)))
    w2_m = w2.astype(mxu_dtype)

    b1_r = b1.reshape(1, H).astype(jnp.float32)
    b2_r = b2.reshape(1, H).astype(jnp.float32)
    w3_row = w3.reshape(1, H).astype(jnp.float32)        # VPU head stays f32
    b3_s = b3.reshape(1, 1).astype(jnp.float32)          # SMEM scalar

    # Batch tile: a multiple of 128 (or the full padded batch for tiny B);
    # clamp so the grid keeps >= 2 steps when possible (v7x: 2 TensorCores).
    b_full = _round_up(B, 16)                            # minimal padded batch
    tb = _round_up(max(int(block_b), 128), 128)
    tb = min(tb, max(128, _round_up(pl.cdiv(B, 2), 128)))
    if tb >= b_full:
        tb = b_full                                      # single full-extent tile
    b_pad = _round_up(B, tb)

    if b_pad != B:
        xa = jnp.pad(xa, ((0, b_pad - B), (0, 0)))

    grid = (b_pad // tb,)
    resident = lambda shape: pl.BlockSpec(shape, lambda i: (0, 0))

    q_pad = pl.pallas_call(
        _critic_kernel,
        out_shape=jax.ShapeDtypeStruct((b_pad, 1), jnp.float32),
        grid=grid,
        in_specs=[
            pl.BlockSpec((tb, d_pad), lambda i: (i, 0)),        # fused [x, a] tile
            resident((d_pad, H)),                               # w1 (resident)
            resident((1, H)),                                   # b1
            resident((H, H)),                                   # w2 (resident)
            resident((1, H)),                                   # b2
            resident((1, H)),                                   # w3 row
            pl.BlockSpec(memory_space=pltpu.MemorySpace.SMEM),  # b3 scalar
        ],
        out_specs=pl.BlockSpec((tb, 1), lambda i: (i, 0)),
        compiler_params=pltpu.CompilerParams(
            dimension_semantics=("parallel",),
            vmem_limit_bytes=(64 << 20) if tb >= 4096 else (32 << 20),
        ),
    )(xa, w1_p, b1_r, w2_m, b2_r, w3_row, b3_s)

    return q_pad[:B]


def xavier_uniform(key, fan_in, fan_out, dtype=jnp.float32):
    # matches torch.nn.init.xavier_uniform_ on a (fan_out, fan_in) Linear weight
    limit = float(np.sqrt(6.0 / (fan_in + fan_out)))
    # stored transposed: (fan_in, fan_out) so the kernel computes act @ w
    return jax.random.uniform(key, (fan_in, fan_out), dtype, minval=-limit, maxval=limit)


def init_params(key, obs_dim, act_dim, hidden=256):
    d_in = obs_dim + act_dim
    k1, k2, k3 = jax.random.split(key, 3)
    w1 = xavier_uniform(k1, d_in, hidden)
    b1 = jnp.zeros((1, hidden), jnp.float32)
    w2 = xavier_uniform(k2, hidden, hidden)
    b2 = jnp.zeros((1, hidden), jnp.float32)
    w3 = xavier_uniform(k3, hidden, 1)
    b3 = jnp.zeros((1, 1), jnp.float32)
    return (w1, b1, w2, b2, w3, b3)


def _reference(x, a, params):
    w1, b1, w2, b2, w3, b3 = params
    xa = jnp.concatenate([x, a], axis=1)
    h = jnp.maximum(xa @ w1 + b1, 0.0)
    h = jnp.maximum(h @ w2 + b2, 0.0)
    return h @ w3 + b3


if __name__ == "__main__":
    key = jax.random.PRNGKey(0)
    kp, kx, ka, kx2, ka2 = jax.random.split(key, 5)

    B, obs_dim, act_dim = 2, 11, 3   # small env-like shapes
    params = init_params(kp, obs_dim, act_dim, hidden=256)
    x = jax.random.normal(kx, (B, obs_dim), jnp.float32)
    a = jax.random.normal(ka, (B, act_dim), jnp.float32)

    # High-precision (f32 MXU operand) path vs the plain-JAX reference.
    # Tolerance allows for XLA's default f32 matmul precision on TPU.
    q = jax.block_until_ready(critic_forward(x, a, params, mxu_dtype=jnp.float32))
    q_ref = _reference(x, a, params)
    np.testing.assert_allclose(np.asarray(q), np.asarray(q_ref), rtol=1e-2, atol=1e-2)
    assert q.shape == (B, 1)

    # Multi-step grid (batch not a multiple of the tile, >= 2 grid steps) with
    # the default bf16 MXU operands (f32 accumulation + f32 epilogue in-kernel).
    B2 = 260
    x2 = jax.random.normal(kx2, (B2, obs_dim), jnp.float32)
    a2 = jax.random.normal(ka2, (B2, act_dim), jnp.float32)
    q2 = jax.block_until_ready(critic_forward(x2, a2, params))
    q2_ref = _reference(x2, a2, params)
    np.testing.assert_allclose(np.asarray(q2), np.asarray(q2_ref), rtol=4e-2, atol=4e-2)
    assert q2.shape == (B2, 1)

    print("KERNEL_OK")
</pallas_src>

<mosaic_0001>
module attributes {stable_mosaic.version = 11 : i64} {
  func.func @_critic_kernel(%arg0: i32, %arg1: memref<16x32xf32, #tpu.memory_space<vmem>>, %arg2: memref<32x256xf32, #tpu.memory_space<vmem>>, %arg3: memref<1x256xf32, #tpu.memory_space<vmem>>, %arg4: memref<256x256xf32, #tpu.memory_space<vmem>>, %arg5: memref<1x256xf32, #tpu.memory_space<vmem>>, %arg6: memref<1x256xf32, #tpu.memory_space<vmem>>, %arg7: memref<1x1xf32, #tpu.memory_space<smem>>, %arg8: memref<16x1xf32, #tpu.memory_space<vmem>>) attributes {dimension_semantics = [#tpu.dimension_semantics<parallel>], iteration_bounds = array<i64: 1>, scalar_prefetch = 0 : i64, scratch_operands = 0 : i64, tpu.core_type = #tpu.core_type<tc>, window_params = [{transform_indices = @transform_0, window_bounds = array<i64: 16, 32>}, {pipeline_mode = #tpu.pipeline_mode<synchronous>, transform_indices = @transform_1, window_bounds = array<i64: 32, 256>}, {pipeline_mode = #tpu.pipeline_mode<synchronous>, transform_indices = @transform_2, window_bounds = array<i64: 1, 256>}, {pipeline_mode = #tpu.pipeline_mode<synchronous>, transform_indices = @transform_3, window_bounds = array<i64: 256, 256>}, {pipeline_mode = #tpu.pipeline_mode<synchronous>, transform_indices = @transform_4, window_bounds = array<i64: 1, 256>}, {pipeline_mode = #tpu.pipeline_mode<synchronous>, transform_indices = @transform_5, window_bounds = array<i64: 1, 256>}, {transform_indices = @transform_6, window_bounds = array<i64: 1, 1>}, {transform_indices = @transform_7, window_bounds = array<i64: 16, 1>}]} {
    %c0 = arith.constant 0 : index
    %c0_0 = arith.constant 0 : index
    %0 = vector.load %arg1[%c0, %c0_0] : memref<16x32xf32, #tpu.memory_space<vmem>>, vector<16x32xf32>
    %c0_1 = arith.constant 0 : index
    %c0_2 = arith.constant 0 : index
    %1 = vector.load %arg2[%c0_1, %c0_2] : memref<32x256xf32, #tpu.memory_space<vmem>>, vector<32x256xf32>
    %cst = arith.constant dense<0.000000e+00> : vector<16x256xf32>
    %2 = tpu.matmul %0, %1, %cst {dimension_numbers = #tpu.dot_dimension_numbers<[1], [0], [0], [1], [0, 0, 1, 1], [], []>} : vector<16x32xf32>, vector<32x256xf32>, vector<16x256xf32> -> vector<16x256xf32>
    %c0_3 = arith.constant 0 : index
    %c0_4 = arith.constant 0 : index
    %3 = vector.load %arg3[%c0_3, %c0_4] : memref<1x256xf32, #tpu.memory_space<vmem>>, vector<1x256xf32>
    %4 = vector.broadcast %3 : vector<1x256xf32> to vector<16x256xf32>
    %5 = arith.addf %2, %4 : vector<16x256xf32>
    %cst_5 = arith.constant 0.000000e+00 : f32
    %6 = vector.broadcast %cst_5 : f32 to vector<16x256xf32>
    %7 = arith.maximumf %5, %6 : vector<16x256xf32>
    %c0_6 = arith.constant 0 : index
    %c0_7 = arith.constant 0 : index
    %8 = vector.load %arg4[%c0_6, %c0_7] : memref<256x256xf32, #tpu.memory_space<vmem>>, vector<256x256xf32>
    %cst_8 = arith.constant dense<0.000000e+00> : vector<16x256xf32>
    %9 = tpu.matmul %7, %8, %cst_8 {dimension_numbers = #tpu.dot_dimension_numbers<[1], [0], [0], [1], [0, 0, 1, 1], [], []>} : vector<16x256xf32>, vector<256x256xf32>, vector<16x256xf32> -> vector<16x256xf32>
    %c0_9 = arith.constant 0 : index
    %c0_10 = arith.constant 0 : index
    %10 = vector.load %arg5[%c0_9, %c0_10] : memref<1x256xf32, #tpu.memory_space<vmem>>, vector<1x256xf32>
    %11 = vector.broadcast %10 : vector<1x256xf32> to vector<16x256xf32>
    %12 = arith.addf %9, %11 : vector<16x256xf32>
    %cst_11 = arith.constant 0.000000e+00 : f32
    %13 = vector.broadcast %cst_11 : f32 to vector<16x256xf32>
    %14 = arith.maximumf %12, %13 : vector<16x256xf32>
    %c0_12 = arith.constant 0 : index
    %c0_13 = arith.constant 0 : index
    %15 = vector.load %arg6[%c0_12, %c0_13] : memref<1x256xf32, #tpu.memory_space<vmem>>, vector<1x256xf32>
    %16 = vector.broadcast %15 : vector<1x256xf32> to vector<16x256xf32>
    %17 = arith.mulf %14, %16 : vector<16x256xf32>
    %cst_14 = arith.constant dense<0.000000e+00> : vector<16xf32>
    %18 = vector.multi_reduction <add>, %17, %cst_14 [1] : vector<16x256xf32> to vector<16xf32>
    %19 = vector.shape_cast %18 : vector<16xf32> to vector<16x1xf32>
    %c0_15 = arith.constant 0 : index
    %c0_16 = arith.constant 0 : index
    %20 = memref.load %arg7[%c0_15, %c0_16] : memref<1x1xf32, #tpu.memory_space<smem>>
    %21 = vector.broadcast %20 : f32 to vector<16x1xf32>
    %22 = arith.addf %19, %21 : vector<16x1xf32>
    %c0_17 = arith.constant 0 : index
    %c0_18 = arith.constant 0 : index
    %23 = vector.load %arg8[%c0_17, %c0_18] : memref<16x1xf32, #tpu.memory_space<vmem>>, vector<16x1xf32>
    tpu.vector_store %arg8[%c0_17, %c0_18], %22 {strides = array<i32>} : memref<16x1xf32, #tpu.memory_space<vmem>>, vector<16x1xf32>,
    return
  }
  func.func @transform_0(%arg0: i32) -> (i32, i32) {
    %c0_i32 = arith.constant 0 : i32
    %c0_i32_0 = arith.constant 0 : i32
    return %arg0, %c0_i32 : i32, i32
  }
  func.func @transform_1(%arg0: i32) -> (i32, i32) {
    %c0_i32 = arith.constant 0 : i32
    %c0_i32_0 = arith.constant 0 : i32
    %c0_i32_1 = arith.constant 0 : i32
    return %c0_i32, %c0_i32_0 : i32, i32
  }
  func.func @transform_2(%arg0: i32) -> (i32, i32) {
    %c0_i32 = arith.constant 0 : i32
    %c0_i32_0 = arith.constant 0 : i32
    %c0_i32_1 = arith.constant 0 : i32
    return %c0_i32, %c0_i32_0 : i32, i32
  }
  func.func @transform_3(%arg0: i32) -> (i32, i32) {
    %c0_i32 = arith.constant 0 : i32
    %c0_i32_0 = arith.constant 0 : i32
    %c0_i32_1 = arith.constant 0 : i32
    return %c0_i32, %c0_i32_0 : i32, i32
  }
  func.func @transform_4(%arg0: i32) -> (i32, i32) {
    %c0_i32 = arith.constant 0 : i32
    %c0_i32_0 = arith.constant 0 : i32
    %c0_i32_1 = arith.constant 0 : i32
    return %c0_i32, %c0_i32_0 : i32, i32
  }
  func.func @transform_5(%arg0: i32) -> (i32, i32) {
    %c0_i32 = arith.constant 0 : i32
    %c0_i32_0 = arith.constant 0 : i32
    %c0_i32_1 = arith.constant 0 : i32
    return %c0_i32, %c0_i32_0 : i32, i32
  }
  func.func @transform_6(%arg0: i32) -> (i32, i32) {
    %c0_i32 = arith.constant 0 : i32
    %c0_i32_0 = arith.constant 0 : i32
    %c0_i32_1 = arith.constant 0 : i32
    return %c0_i32, %c0_i32_0 : i32, i32
  }
  func.func @transform_7(%arg0: i32) -> (i32, i32) {
    %c0_i32 = arith.constant 0 : i32
    %c0_i32_0 = arith.constant 0 : i32
    return %arg0, %c0_i32 : i32, i32
  }
}

</mosaic_0001>

<llo_original>
// kernel: tpu_custom_call.1
$region0: #{tpu_custom_call.1}
  #allocation0 [shape = 'u32[]', space=smem, size = 0x4, offset = 0x4, fixed_abs, tag = 'smem constant byte address 0x4 - core index']
  #allocation1 [shape = 'u32[144,128]{1,0:T(1,128)}', space=vmem, size = 0x12000, scoped, tag = 'internal scratch']
  #allocation2 [shape = 'f32[1,1]{1,0:T(1,128)S(6)}', space=smem, size = 0x200, scoped, tag = 'scoped memory for tpu_custom_call.1']
  %s0 = inlined_call_operand.hbm [shape: f32[16,32], index: 0, kind: input, shape index: {}]
  %s1 = inlined_call_operand.hbm [shape: f32[32,256], index: 1, kind: input, shape index: {}]
  %s2 = inlined_call_operand.vmem [shape: f32[1,256], index: 2, kind: input, shape index: {}]
  %s3 = inlined_call_operand.hbm [shape: f32[256,256], index: 3, kind: input, shape index: {}]
  %s4 = inlined_call_operand.vmem [shape: f32[1,256], index: 4, kind: input, shape index: {}]
  %s5 = inlined_call_operand.vmem [shape: f32[1,256], index: 5, kind: input, shape index: {}]
  %s6 = inlined_call_operand.<no memory space> [shape: f32[1,1], index: 6, kind: input, shape index: {}]
  %s7 = inlined_call_operand.vmem [shape: f32[16,1], index: 7, kind: output, shape index: {}]
  %s8 = sld [smem:[#allocation0]]
  $region50: #{tpu_custom_call.1} parent=0
    _
  %s10 = ssub.s32 1, %s8
  %s11 = scalar_select 0, %s10, %s8
  %12 = sst [smem:[#allocation2]] %s6
  $region1: #{tpu_custom_call.1} parent=0
    #allocation3 [shape = 'u8[8192]{0}', space=vmem, size = 0x2000, scoped, tag = 'input window, operand 0, single buffered']
    #allocation4 [shape = 's32[1]{0}', space=sflag, size = 0x4, scoped, tag = 'scoped memory for tpu_custom_call.1']
    #allocation5 [shape = 'u8[32768]{0}', space=vmem, size = 0x8000, scoped, tag = 'input window, operand 1, single buffered']
    #allocation6 [shape = 's32[1]{0}', space=sflag, size = 0x4, scoped, tag = 'scoped memory for tpu_custom_call.1']
    #allocation7 [shape = 'u8[262144]{0}', space=vmem, size = 0x40000, scoped, tag = 'input window, operand 3, single buffered']
    %13 = vsyncpa [#allocation4], 0
    %14 = vsyncpa [#allocation6], 0
    // Predicated region
    $region2: #{tpu_custom_call.1} parent=1 // pred_check
      _
    $region3: #{tpu_custom_call.1} parent=1 // pred_check_branch
      %16 = sbr.rel (0) target = $region5
    $region4: #{tpu_custom_call.1} parent=1 // pred_region
      %s18 = ssub.s32 256, 256
      %19 = vsyncadd [#allocation4], %s18
      %s20 = sshll.u32 [#allocation3], 4
      %s21 = int_to_ptr.vmem [resolvable:$true] %s20
      %26 = dma.hbm_to_vmem [thread:$0]  %s0, 256, %s21, [#allocation4], 128, 128, 8
    $region5: #{tpu_custom_call.1} parent=1 // pred_fallthru
      _
    // Predicated region
    $region6: #{tpu_custom_call.1} parent=1 // pred_check
      _
    $region7: #{tpu_custom_call.1} parent=1 // pred_check_branch
      %28 = sbr.rel (0) target = $region9
    $region8: #{tpu_custom_call.1} parent=1 // pred_region
      %s30 = ssub.s32 1024, 1024
      %31 = vsyncadd [#allocation6], %s30
      %s32 = sshll.u32 [#allocation5], 4
      %s33 = int_to_ptr.vmem [resolvable:$true] %s32
      %38 = dma.hbm_to_vmem [thread:$0]  %s1, 1024, %s33, [#allocation6], 256, 256, 16
    $region9: #{tpu_custom_call.1} parent=1 // pred_fallthru
      _
    // Predicated region
    $region10: #{tpu_custom_call.1} parent=1 // pred_check
      _
    $region11: #{tpu_custom_call.1} parent=1 // pred_check_branch
      %40 = sbr.rel (0) target = $region13
    $region12: #{tpu_custom_call.1} parent=1 // pred_region
      _
    $region13: #{tpu_custom_call.1} parent=1 // pred_fallthru
      _
    // Predicated region
    $region14: #{tpu_custom_call.1} parent=1 // pred_check
      _
    $region15: #{tpu_custom_call.1} parent=1 // pred_check_branch
      %42 = sbr.rel (0) target = $region17
    $region16: #{tpu_custom_call.1} parent=1 // pred_region
      %s44 = ssub.s32 8192, 8192
      %45 = vsyncadd [#allocation6], %s44
      %s46 = sshll.u32 [#allocation7], 4
      %s47 = int_to_ptr.vmem [resolvable:$true] %s46
      %52 = dma.hbm_to_vmem [thread:$0]  %s3, 8192, %s47, [#allocation6], 256, 256, 16
    $region17: #{tpu_custom_call.1} parent=1 // pred_fallthru
      _
    // Predicated region
    $region18: #{tpu_custom_call.1} parent=1 // pred_check
      _
    $region19: #{tpu_custom_call.1} parent=1 // pred_check_branch
      %54 = sbr.rel (0) target = $region21
    $region20: #{tpu_custom_call.1} parent=1 // pred_region
      _
    $region21: #{tpu_custom_call.1} parent=1 // pred_fallthru
      _
    // Predicated region
    $region22: #{tpu_custom_call.1} parent=1 // pred_check
      _
    $region23: #{tpu_custom_call.1} parent=1 // pred_check_branch
      %56 = sbr.rel (0) target = $region25
    $region24: #{tpu_custom_call.1} parent=1 // pred_region
      _
    $region25: #{tpu_custom_call.1} parent=1 // pred_fallthru
      _
    // Predicated region
    $region26: #{tpu_custom_call.1} parent=1 // pred_check
      _
    $region27: #{tpu_custom_call.1} parent=1 // pred_check_branch
      %58 = sbr.rel (0) target = $region29
    $region28: #{tpu_custom_call.1} parent=1 // pred_region
      _
    $region29: #{tpu_custom_call.1} parent=1 // pred_fallthru
      _
    // Predicated region
    $region30: #{tpu_custom_call.1} parent=1 // pred_check
      _
    $region31: #{tpu_custom_call.1} parent=1 // pred_check_branch
      %60 = sbr.rel (0) target = $region33
    $region32: #{tpu_custom_call.1} parent=1 // pred_region
      %61 = dma.done [#allocation4], 256
    $region33: #{tpu_custom_call.1} parent=1 // pred_fallthru
      _
    // Predicated region
    $region34: #{tpu_custom_call.1} parent=1 // pred_check
      _
    $region35: #{tpu_custom_call.1} parent=1 // pred_check_branch
      %63 = sbr.rel (0) target = $region37
    $region36: #{tpu_custom_call.1} parent=1 // pred_region
      %64 = dma.done [#allocation6], 1024
    $region37: #{tpu_custom_call.1} parent=1 // pred_fallthru
      _
    // Predicated region
    $region38: #{tpu_custom_call.1} parent=1 // pred_check
      _
    $region39: #{tpu_custom_call.1} parent=1 // pred_check_branch
      %66 = sbr.rel (0) target = $region41
    $region40: #{tpu_custom_call.1} parent=1 // pred_region
      %67 = dma.done [#allocation6], 8192
    $region41: #{tpu_custom_call.1} parent=1 // pred_fallthru
      _
    %v68 = vld [vmem:[#allocation3] sm:$0xff]
    %v69 = vld [vmem:[#allocation3 + $0x8] sm:$0xff]
    %v70 = vld [vmem:[#allocation5] sm:$0xff]
    %v71 = vld [vmem:[#allocation5 + $0x8] sm:$0xff]
    %v72 = vld [vmem:[#allocation5 + $0x10] sm:$0xff]
    %v73 = vld [vmem:[#allocation5 + $0x18] sm:$0xff]
    %v74 = vld [vmem:[#allocation5 + $0x20] sm:$0xff]
    %v75 = vld [vmem:[#allocation5 + $0x28] sm:$0xff]
    %v76 = vld [vmem:[#allocation5 + $0x30] sm:$0xff]
    %v77 = vld [vmem:[#allocation5 + $0x38] sm:$0xff]
    %v78 = vld [vmem:[%s2] sm:$0x3]
    %v80 = vlaneseq
    %v81 = vshrl.u32 %v80, 7
    %v82 = vsub.s32 0, %v81
    %v83 = vrot.slane %v78, %v82
    %v84 = vlaneseq
    %v85 = vshrl.u32 %v84, 7
    %v86 = vsub.s32 1, %v85
    %v87 = vrot.slane %v78, %v86
    %vm90 = vcmask 261120
    %v92 = vsel %vm90, %v68, 0
    %v95 = vsel %vm90, %v69, 0
    %97 = vmatprep.subr.mxu0 0.0
    %98 = vmatpush1.msra.mxu0 0.0
    %99 = vmatprep.subr.mxu0 0.0
    %100 = vmatpush1.msra.mxu0 0.0
    %101 = vmatprep.subr.mxu0 0.0
    %102 = vmatpush1.msra.mxu0 0.0
    %103 = vmatprep.subr.mxu0 0.0
    %104 = vmatpush1.msra.mxu0 0.0
    %105 = vmatprep.subr.mxu0 0.0
    %106 = vmatpush1.msra.mxu0 0.0
    %107 = vmatprep.subr.mxu0 0.0
    %108 = vmatpush1.msra.mxu0 0.0
    %109 = vmatprep.subr.mxu0 0.0
    %110 = vmatpush1.msra.mxu0 0.0
    %111 = vmatprep.subr.mxu0 0.0
    %112 = vmatpush1.msra.mxu0 0.0
    %113 = vmatprep.subr.mxu0 0.0
    %114 = vmatpush1.msra.mxu0 0.0
    %115 = vmatprep.subr.mxu0 0.0
    %116 = vmatpush1.msra.mxu0 0.0
    %117 = vmatprep.subr.mxu0 0.0
    %118 = vmatpush1.msra.mxu0 0.0
    %119 = vmatprep.subr.mxu0 0.0
    %120 = vmatpush1.msra.mxu0 0.0
    %121 = vmatprep.subr.mxu0 %v77
    %122 = vmatpush1.msra.mxu0 %v76
    %123 = vmatprep.subr.mxu0 %v75
    %124 = vmatpush1.msra.mxu0 %v74
    %125 = vmatprep.subr.mxu0 %v73
    %126 = vmatpush1.msra.mxu0 %v72
    %127 = vmatprep.subr.mxu0 %v71
    %128 = vmatpush1.msra.mxu0 %v70
    %129 = vmatprep.subr.mxu0 0.0
    %130 = vmatpush2.msra.mxu0 0.0
    %131 = vmatprep.subr.mxu0 0.0
    %132 = vmatpush2.msra.mxu0 0.0
    %133 = vmatprep.subr.mxu0 0.0
    %134 = vmatpush2.msra.mxu0 0.0
    %135 = vmatprep.subr.mxu0 0.0
    %136 = vmatpush2.msra.mxu0 0.0
    %137 = vmatprep.subr.mxu0 0.0
    %138 = vmatpush2.msra.mxu0 0.0
    %139 = vmatprep.subr.mxu0 0.0
    %140 = vmatpush2.msra.mxu0 0.0
    %141 = vmatprep.subr.mxu0 0.0
    %142 = vmatpush2.msra.mxu0 0.0
    %143 = vmatprep.subr.mxu0 0.0
    %144 = vmatpush2.msra.mxu0 0.0
    %145 = vmatprep.subr.mxu0 0.0
    %146 = vmatpush2.msra.mxu0 0.0
    %147 = vmatprep.subr.mxu0 0.0
    %148 = vmatpush2.msra.mxu0 0.0
    %149 = vmatprep.subr.mxu0 0.0
    %150 = vmatpush2.msra.mxu0 0.0
    %151 = vmatprep.subr.mxu0 0.0
    %152 = vmatpush2.msra.mxu0 0.0
    %153 = vmatprep.subr.mxu0 0.0
    %154 = vmatpush2.msra.mxu0 0.0
    %155 = vmatprep.subr.mxu0 0.0
    %156 = vmatpush2.msra.mxu0 0.0
    %157 = vmatprep.subr.mxu0 0.0
    %158 = vmatpush2.msra.mxu0 0.0
    %159 = vmatprep.subr.mxu0 0.0
    %160 = vmatpush2.msra.mxu0 0.0
    %161 = vmatprep.mubr.f32.mxu0 0.0
    %162 = vmatmul.mubr.f32.gmra.mxu0 %v92
    %v163 = vpop.f32.mrf.mxu0
    %v164 = vadd.f32 %v83, %v163
    %v165 = vpop.f32.mrf.mxu0
    %v166 = vadd.f32 %v87, %v165
    %167 = vmatprep.mubr.f32.mxu0 0.0
    %168 = vmatmul.mubr.f32.gmra.mxu0 %v95
    %v169 = vpop.f32.mrf.mxu0
    %v170 = vadd.f32 %v83, %v169
    %v171 = vpop.f32.mrf.mxu0
    %v172 = vadd.f32 %v87, %v171
    %173 = vdwg.mxu0
    %v174 = vmax.f32 %v164, 0.0
    %v175 = vmax.f32 %v166, 0.0
    %v176 = vmax.f32 %v170, 0.0
    %v177 = vmax.f32 %v172, 0.0
    %v178 = vld [vmem:[#allocation7] sm:$0xff]
    %v179 = vld [vmem:[#allocation7 + $0x8] sm:$0xff]
    %v180 = vld [vmem:[#allocation7 + $0x10] sm:$0xff]
    %v181 = vld [vmem:[#allocation7 + $0x18] sm:$0xff]
    %v182 = vld [vmem:[#allocation7 + $0x20] sm:$0xff]
    %v183 = vld [vmem:[#allocation7 + $0x28] sm:$0xff]
    %v184 = vld [vmem:[#allocation7 + $0x30] sm:$0xff]
    %v185 = vld [vmem:[#allocation7 + $0x38] sm:$0xff]
    %v186 = vld [vmem:[#allocation7 + $0x40] sm:$0xff]
    %v187 = vld [vmem:[#allocation7 + $0x48] sm:$0xff]
    %v188 = vld [vmem:[#allocation7 + $0x50] sm:$0xff]
    %v189 = vld [vmem:[#allocation7 + $0x58] sm:$0xff]
    %v190 = vld [vmem:[#allocation7 + $0x60] sm:$0xff]
    %v191 = vld [vmem:[#allocation7 + $0x68] sm:$0xff]
    %v192 = vld [vmem:[#allocation7 + $0x70] sm:$0xff]
    %v193 = vld [vmem:[#allocation7 + $0x78] sm:$0xff]
    %v194 = vld [vmem:[#allocation7 + $0x80] sm:$0xff]
    %v195 = vld [vmem:[#allocation7 + $0x88] sm:$0xff]
    %v196 = vld [vmem:[#allocation7 + $0x90] sm:$0xff]
    %v197 = vld [vmem:[#allocation7 + $0x98] sm:$0xff]
    %v198 = vld [vmem:[#allocation7 + $0xa0] sm:$0xff]
    %v199 = vld [vmem:[#allocation7 + $0xa8] sm:$0xff]
    %v200 = vld [vmem:[#allocation7 + $0xb0] sm:$0xff]
    %v201 = vld [vmem:[#allocation7 + $0xb8] sm:$0xff]
    %v202 = vld [vmem:[#allocation7 + $0xc0] sm:$0xff]
    %v203 = vld [vmem:[#allocation7 + $0xc8] sm:$0xff]
    %v204 = vld [vmem:[#allocation7 + $0xd0] sm:$0xff]
    %v205 = vld [vmem:[#allocation7 + $0xd8] sm:$0xff]
    %v206 = vld [vmem:[#allocation7 + $0xe0] sm:$0xff]
    %v207 = vld [vmem:[#allocation7 + $0xe8] sm:$0xff]
    %v208 = vld [vmem:[#allocation7 + $0xf0] sm:$0xff]
    %v209 = vld [vmem:[#allocation7 + $0xf8] sm:$0xff]
    %v210 = vld [vmem:[#allocation7 + $0x100] sm:$0xff]
    %v211 = vld [vmem:[#allocation7 + $0x108] sm:$0xff]
    %v212 = vld [vmem:[#allocation7 + $0x110] sm:$0xff]
    %v213 = vld [vmem:[#allocation7 + $0x118] sm:$0xff]
    %v214 = vld [vmem:[#allocation7 + $0x120] sm:$0xff]
    %v215 = vld [vmem:[#allocation7 + $0x128] sm:$0xff]
    %v216 = vld [vmem:[#allocation7 + $0x130] sm:$0xff]
    %v217 = vld [vmem:[#allocation7 + $0x138] sm:$0xff]
    %v218 = vld [vmem:[#allocation7 + $0x140] sm:$0xff]
    %v219 = vld [vmem:[#allocation7 + $0x148] sm:$0xff]
    %v220 = vld [vmem:[#allocation7 + $0x150] sm:$0xff]
    %v221 = vld [vmem:[#allocation7 + $0x158] sm:$0xff]
    %v222 = vld [vmem:[#allocation7 + $0x160] sm:$0xff]
    %v223 = vld [vmem:[#allocation7 + $0x168] sm:$0xff]
    %v224 = vld [vmem:[#allocation7 + $0x170] sm:$0xff]
    %v225 = vld [vmem:[#allocation7 + $0x178] sm:$0xff]
    %v226 = vld [vmem:[#allocation7 + $0x180] sm:$0xff]
    %v227 = vld [vmem:[#allocation7 + $0x188] sm:$0xff]
    %v228 = vld [vmem:[#allocation7 + $0x190] sm:$0xff]
    %v229 = vld [vmem:[#allocation7 + $0x198] sm:$0xff]
    %v230 = vld [vmem:[#allocation7 + $0x1a0] sm:$0xff]
    %v231 = vld [vmem:[#allocation7 + $0x1a8] sm:$0xff]
    %v232 = vld [vmem:[#allocation7 + $0x1b0] sm:$0xff]
    %v233 = vld [vmem:[#allocation7 + $0x1b8] sm:$0xff]
    %v234 = vld [vmem:[#allocation7 + $0x1c0] sm:$0xff]
    %v235 = vld [vmem:[#allocation7 + $0x1c8] sm:$0xff]
    %v236 = vld [vmem:[#allocation7 + $0x1d0] sm:$0xff]
    %v237 = vld [vmem:[#allocation7 + $0x1d8] sm:$0xff]
    %v238 = vld [vmem:[#allocation7 + $0x1e0] sm:$0xff]
    %v239 = vld [vmem:[#allocation7 + $0x1e8] sm:$0xff]
    %v240 = vld [vmem:[#allocation7 + $0x1f0] sm:$0xff]
    %v241 = vld [vmem:[#allocation7 + $0x1f8] sm:$0xff]
    %v242 = vld [vmem:[%s4] sm:$0x3]
    %v244 = vlaneseq
    %v245 = vshrl.u32 %v244, 7
    %v246 = vsub.s32 0, %v245
    %v247 = vrot.slane %v242, %v246
    %v248 = vlaneseq
    %v249 = vshrl.u32 %v248, 7
    %v250 = vsub.s32 1, %v249
    %v251 = vrot.slane %v242, %v250
    %254 = vmatprep.subr.mxu0 %v209
    %255 = vmatpush1.msra.mxu0 %v208
    %256 = vmatprep.subr.mxu0 %v207
    %257 = vmatpush1.msra.mxu0 %v206
    %258 = vmatprep.subr.mxu0 %v205
    %259 = vmatpush1.msra.mxu0 %v204
    %260 = vmatprep.subr.mxu0 %v203
    %261 = vmatpush1.msra.mxu0 %v202
    %262 = vmatprep.subr.mxu0 %v201
    %263 = vmatpush1.msra.mxu0 %v200
    %264 = vmatprep.subr.mxu0 %v199
    %265 = vmatpush1.msra.mxu0 %v198
    %266 = vmatprep.subr.mxu0 %v197
    %267 = vmatpush1.msra.mxu0 %v196
    %268 = vmatprep.subr.mxu0 %v195
    %269 = vmatpush1.msra.mxu0 %v194
    %270 = vmatprep.subr.mxu0 %v193
    %271 = vmatpush1.msra.mxu0 %v192
    %272 = vmatprep.subr.mxu0 %v191
    %273 = vmatpush1.msra.mxu0 %v190
    %274 = vmatprep.subr.mxu0 %v189
    %275 = vmatpush1.msra.mxu0 %v188
    %276 = vmatprep.subr.mxu0 %v187
    %277 = vmatpush1.msra.mxu0 %v186
    %278 = vmatprep.subr.mxu0 %v185
    %279 = vmatpush1.msra.mxu0 %v184
    %280 = vmatprep.subr.mxu0 %v183
    %281 = vmatpush1.msra.mxu0 %v182
    %282 = vmatprep.subr.mxu0 %v181
    %283 = vmatpush1.msra.mxu0 %v180
    %284 = vmatprep.subr.mxu0 %v179
    %285 = vmatpush1.msra.mxu0 %v178
    %286 = vmatprep.subr.mxu0 %v241
    %287 = vmatpush2.msra.mxu0 %v240
    %288 = vmatprep.subr.mxu0 %v239
    %289 = vmatpush2.msra.mxu0 %v238
    %290 = vmatprep.subr.mxu0 %v237
    %291 = vmatpush2.msra.mxu0 %v236
    %292 = vmatprep.subr.mxu0 %v235
    %293 = vmatpush2.msra.mxu0 %v234
    %294 = vmatprep.subr.mxu0 %v233
    %295 = vmatpush2.msra.mxu0 %v232
    %296 = vmatprep.subr.mxu0 %v231
    %297 = vmatpush2.msra.mxu0 %v230
    %298 = vmatprep.subr.mxu0 %v229
    %299 = vmatpush2.msra.mxu0 %v228
    %300 = vmatprep.subr.mxu0 %v227
    %301 = vmatpush2.msra.mxu0 %v226
    %302 = vmatprep.subr.mxu0 %v225
    %303 = vmatpush2.msra.mxu0 %v224
    %304 = vmatprep.subr.mxu0 %v223
    %305 = vmatpush2.msra.mxu0 %v222
    %306 = vmatprep.subr.mxu0 %v221
    %307 = vmatpush2.msra.mxu0 %v220
    %308 = vmatprep.subr.mxu0 %v219
    %309 = vmatpush2.msra.mxu0 %v218
    %310 = vmatprep.subr.mxu0 %v217
    %311 = vmatpush2.msra.mxu0 %v216
    %312 = vmatprep.subr.mxu0 %v215
    %313 = vmatpush2.msra.mxu0 %v214
    %314 = vmatprep.subr.mxu0 %v213
    %315 = vmatpush2.msra.mxu0 %v212
    %316 = vmatprep.subr.mxu0 %v211
    %317 = vmatpush2.msra.mxu0 %v210
    %318 = vmatprep.mubr.f32.mxu0 %v175
    %319 = vmatmul.mubr.f32.gmra.mxu0 %v174
    %v320 = vpop.f32.mrf.mxu0
    %v321 = vadd.f32 %v247, %v320
    %v322 = vpop.f32.mrf.mxu0
    %v323 = vadd.f32 %v251, %v322
    %324 = vmatprep.mubr.f32.mxu0 %v177
    %325 = vmatmul.mubr.f32.gmra.mxu0 %v176
    %v326 = vpop.f32.mrf.mxu0
    %v327 = vadd.f32 %v247, %v326
    %v328 = vpop.f32.mrf.mxu0
    %v329 = vadd.f32 %v251, %v328
    %330 = vdwg.mxu0
    %v331 = vmax.f32 %v321, 0.0
    %v332 = vmax.f32 %v323, 0.0
    %v333 = vmax.f32 %v327, 0.0
    %v334 = vmax.f32 %v329, 0.0
    %v335 = vld [vmem:[%s5] sm:$0x3]
    %v337 = vlaneseq
    %v338 = vshrl.u32 %v337, 7
    %v339 = vsub.s32 0, %v338
    %v340 = vrot.slane %v335, %v339
    %v341 = vlaneseq
    %v342 = vshrl.u32 %v341, 7
    %v343 = vsub.s32 1, %v342
    %v344 = vrot.slane %v335, %v343
    %v347 = vmul.f32 %v331, %v340
    %v348 = vmul.f32 %v332, %v344
    %v349 = vmul.f32 %v333, %v340
    %v350 = vmul.f32 %v334, %v344
    %v351 = vadd.f32 %v347, %v348
    %352 = vadd.xlane.f32.xlu0 %v351
    %v353 = vpop.xlane.xlu0 %352
    %v354 = vadd.f32 %v349, %v350
    %355 = vadd.xlane.f32.xlu0 %v354
    %v356 = vpop.xlane.xlu0 %355
    %s357 = sld [smem:[#allocation2]]
    %v358 = vstv %s357
    %v359 = vadd.f32 %v353, %v358
    %v360 = vadd.f32 %v356, %v358
    %vm361 = vcmask 7168
    %362 = vst.msk [vmem:[%s7] sm:$0xff] %vm361, %v359
    %363 = vst.msk [vmem:[%s7 + $0x8] sm:$0xff] %vm361, %v360
    // Predicated region
    $region42: #{tpu_custom_call.1} parent=1 // pred_check
      _
    $region43: #{tpu_custom_call.1} parent=1 // pred_check_branch
      %365 = sbr.rel (0) target = $region45
    $region44: #{tpu_custom_call.1} parent=1 // pred_region
      _
    $region45: #{tpu_custom_call.1} parent=1 // pred_fallthru
      _
    // Predicated region
    $region46: #{tpu_custom_call.1} parent=1 // pred_check
      _
    $region47: #{tpu_custom_call.1} parent=1 // pred_check_branch
      %367 = sbr.rel (0) target = $region49
    $region48: #{tpu_custom_call.1} parent=1 // pred_region
      _
    $region49: #{tpu_custom_call.1} parent=1 // pred_fallthru
      _
    %368 = vsyncpa [#allocation4], 1
    %369 = vsyncpa [#allocation6], 1

</llo_original>
